<compile_context>
chip_gen: v5e
topology: v5e:2x2
jax: 0.10.0
libtpu: 0.0.40
codegen_flags: <defaults>
</compile_context>

<pallas_src>
import jax
import jax.numpy as jnp
from jax.experimental import pallas as pl
from jax.experimental.pallas import tpu as pltpu


def _fbank_aug_kernel(x_ref, tpos_ref, tlen_ref, fpos_ref, flen_ref, o_ref):
    """x_ref/o_ref: (B_BLK, F, T_TILE) VMEM blocks.
    *_ref params: (B_BLK, 1, 1) int32 VMEM blocks."""
    x = x_ref[...]
    _, Fdim, Ttile = x.shape

    # Global time offset of this tile (grid axis 1 tiles the time dim).
    t0 = pl.program_id(1) * Ttile

    # Minimal-shape index vectors; compares broadcast against the (B_BLK,1,1)
    # per-batch params -> (B_BLK,1,T) and (B_BLK,F,1) stripe masks.
    t_idx = t0 + jax.lax.broadcasted_iota(jnp.int32, (1, 1, Ttile), 2)
    f_idx = jax.lax.broadcasted_iota(jnp.int32, (1, Fdim, 1), 1)

    t_pos = tpos_ref[...]
    t_len = tlen_ref[...]
    f_pos = fpos_ref[...]
    f_len = flen_ref[...]

    time_mask = (t_idx >= t_pos) & (t_idx < t_pos + t_len)   # (B_BLK, 1, T_TILE)
    freq_mask = (f_idx >= f_pos) & (f_idx < f_pos + f_len)   # (B_BLK, F, 1)

    # Two narrow-mask selects; no full-size zero tensor or boolean union.
    y = jnp.where(freq_mask, 0.0, x)
    o_ref[...] = jnp.where(time_mask, 0.0, y)


def _choose_tiles(B, Fdim, T, itemsize):
    """Pick (B_BLK, T_TILE) so each data block is <= ~2 MiB.

    2x double-buffered input + output blocks then stay well inside the default
    scoped-VMEM limit on every generation (including v7x's 64 MiB VMEM).
    T_TILE is either the full time axis (satisfies the BlockSpec full-extent
    rule) or a lane-dense multiple of 128.
    """
    target = 2 * 1024 * 1024
    if Fdim * T * itemsize <= target:
        t_tile = T
    else:
        t_tile = max(128, (target // (Fdim * itemsize)) // 128 * 128)
    per_batch = Fdim * t_tile * itemsize
    b_blk = int(max(1, min(B, 16, target // max(1, per_batch))))
    return b_blk, t_tile


def fbank_aug_apply(x, t_pos, t_len, f_pos, f_len):
    """Zero x over [t_pos, t_pos+t_len) along time and [f_pos, f_pos+f_len)
    along freq (per batch). x: (B, F, T); params: int arrays of shape (B,)."""
    B, Fdim, T = x.shape
    itemsize = jnp.dtype(x.dtype).itemsize
    b_blk, t_tile = _choose_tiles(B, Fdim, T, itemsize)

    def as_param(p):
        return jnp.asarray(p).astype(jnp.int32).reshape(B, 1, 1)

    params = [as_param(p) for p in (t_pos, t_len, f_pos, f_len)]

    grid = (pl.cdiv(B, b_blk), pl.cdiv(T, t_tile))

    x_spec = pl.BlockSpec((b_blk, Fdim, t_tile), lambda bb, tt: (bb, 0, tt))
    p_spec = pl.BlockSpec((b_blk, 1, 1), lambda bb, tt: (bb, 0, 0))

    return pl.pallas_call(
        _fbank_aug_kernel,
        out_shape=jax.ShapeDtypeStruct(x.shape, x.dtype),
        grid=grid,
        in_specs=[x_spec, p_spec, p_spec, p_spec, p_spec],
        out_specs=x_spec,
        compiler_params=pltpu.CompilerParams(
            dimension_semantics=("parallel", "parallel")),
    )(x, *params)


def _sample_mask_params(key, B, Fdim, T,
                        freq_mask_width=(0, 8), time_mask_width=(0, 10)):
    """Mirror torch.randint semantics (exclusive high, position range based on
    the max sampled length across the batch)."""
    k1, k2, k3, k4 = jax.random.split(key, 4)
    # time mask (dim=2 in PyTorch)
    t_len = jax.random.randint(k1, (B,), time_mask_width[0], time_mask_width[1])
    t_pos = jax.random.randint(k2, (B,), 0, jnp.maximum(1, T - jnp.max(t_len)))
    # freq mask (dim=1 in PyTorch)
    f_len = jax.random.randint(k3, (B,), freq_mask_width[0], freq_mask_width[1])
    f_pos = jax.random.randint(k4, (B,), 0, jnp.maximum(1, Fdim - jnp.max(f_len)))
    return t_pos, t_len, f_pos, f_len


def fbank_aug(x, key, freq_mask_width=(0, 8), time_mask_width=(0, 10)):
    """JAX/Pallas equivalent of FbankAug.forward. x: (B, F, T)."""
    B, Fdim, T = x.shape
    params = _sample_mask_params(key, B, Fdim, T, freq_mask_width, time_mask_width)
    return fbank_aug_apply(x, *params)


def _reference(x, t_pos, t_len, f_pos, f_len):
    """Pure-jnp reference of the masking (same math as the PyTorch module)."""
    B, Fdim, T = x.shape
    t_ar = jnp.arange(T)[None, :]
    f_ar = jnp.arange(Fdim)[None, :]
    tmask = (t_ar >= t_pos[:, None]) & (t_ar < (t_pos + t_len)[:, None])  # (B, T)
    fmask = (f_ar >= f_pos[:, None]) & (f_ar < (f_pos + f_len)[:, None])  # (B, F)
    mask = tmask[:, None, :] | fmask[:, :, None]                          # (B, F, T)
    return jnp.where(mask, 0.0, x)


if __name__ == "__main__":
    key = jax.random.PRNGKey(0)
    k_data, k_mask = jax.random.split(key)

    B, Fdim, T = 4, 80, 300          # (batch, fea, time) — small fbank-like shape
    x = jax.random.normal(k_data, (B, Fdim, T), dtype=jnp.float32)

    # Sample params once so the kernel output can be checked against a
    # reference jnp implementation (non-vacuous correctness check).
    t_pos, t_len, f_pos, f_len = _sample_mask_params(k_mask, B, Fdim, T)

    out = jax.block_until_ready(fbank_aug_apply(x, t_pos, t_len, f_pos, f_len))
    assert out.shape == x.shape and out.dtype == x.dtype

    ref = _reference(x, t_pos, t_len, f_pos, f_len)
    assert bool(jnp.all(out == ref)), "Pallas output does not match reference mask"

    # Module-equivalent forward path (samples its own masks from the same key).
    out2 = jax.block_until_ready(fbank_aug(x, k_mask))
    assert bool(jnp.all(out2 == ref))

    print("KERNEL_OK")
</pallas_src>

<mosaic_0001>
module attributes {stable_mosaic.version = 11 : i64} {
  func.func @_fbank_aug_kernel(%arg0: i32, %arg1: i32, %arg2: memref<4x80x300xf32, #tpu.memory_space<vmem>>, %arg3: memref<4x1x1xi32, #tpu.memory_space<vmem>>, %arg4: memref<4x1x1xi32, #tpu.memory_space<vmem>>, %arg5: memref<4x1x1xi32, #tpu.memory_space<vmem>>, %arg6: memref<4x1x1xi32, #tpu.memory_space<vmem>>, %arg7: memref<4x80x300xf32, #tpu.memory_space<vmem>>) attributes {dimension_semantics = [#tpu.dimension_semantics<parallel>, #tpu.dimension_semantics<parallel>], iteration_bounds = array<i64: 1, 1>, scalar_prefetch = 0 : i64, scratch_operands = 0 : i64, tpu.core_type = #tpu.core_type<tc>, window_params = [{transform_indices = @transform_0, window_bounds = array<i64: 4, 80, 300>}, {transform_indices = @transform_1, window_bounds = array<i64: 4, 1, 1>}, {transform_indices = @transform_2, window_bounds = array<i64: 4, 1, 1>}, {transform_indices = @transform_3, window_bounds = array<i64: 4, 1, 1>}, {transform_indices = @transform_4, window_bounds = array<i64: 4, 1, 1>}, {transform_indices = @transform_5, window_bounds = array<i64: 4, 80, 300>}]} {
    %c0 = arith.constant 0 : index
    %c0_0 = arith.constant 0 : index
    %c0_1 = arith.constant 0 : index
    %0 = vector.load %arg2[%c0, %c0_0, %c0_1] : memref<4x80x300xf32, #tpu.memory_space<vmem>>, vector<4x80x300xf32>
    %c300_i32 = arith.constant 300 : i32
    %1 = arith.muli %arg1, %c300_i32 : i32
    %2 = tpu.iota {dimensions = array<i32: 2>} : vector<1x1x300xi32>
    %3 = vector.broadcast %1 : i32 to vector<1x1x300xi32>
    %4 = arith.addi %3, %2 : vector<1x1x300xi32>
    %5 = tpu.iota {dimensions = array<i32: 1>} : vector<1x80x1xi32>
    %c0_2 = arith.constant 0 : index
    %c0_3 = arith.constant 0 : index
    %c0_4 = arith.constant 0 : index
    %6 = vector.load %arg3[%c0_2, %c0_3, %c0_4] : memref<4x1x1xi32, #tpu.memory_space<vmem>>, vector<4x1x1xi32>
    %c0_5 = arith.constant 0 : index
    %c0_6 = arith.constant 0 : index
    %c0_7 = arith.constant 0 : index
    %7 = vector.load %arg4[%c0_5, %c0_6, %c0_7] : memref<4x1x1xi32, #tpu.memory_space<vmem>>, vector<4x1x1xi32>
    %c0_8 = arith.constant 0 : index
    %c0_9 = arith.constant 0 : index
    %c0_10 = arith.constant 0 : index
    %8 = vector.load %arg5[%c0_8, %c0_9, %c0_10] : memref<4x1x1xi32, #tpu.memory_space<vmem>>, vector<4x1x1xi32>
    %c0_11 = arith.constant 0 : index
    %c0_12 = arith.constant 0 : index
    %c0_13 = arith.constant 0 : index
    %9 = vector.load %arg6[%c0_11, %c0_12, %c0_13] : memref<4x1x1xi32, #tpu.memory_space<vmem>>, vector<4x1x1xi32>
    %10 = vector.broadcast %4 : vector<1x1x300xi32> to vector<4x1x300xi32>
    %11 = vector.broadcast %6 : vector<4x1x1xi32> to vector<4x1x300xi32>
    %12 = arith.cmpi sge, %10, %11 : vector<4x1x300xi32>
    %13 = arith.addi %6, %7 : vector<4x1x1xi32>
    %14 = vector.broadcast %4 : vector<1x1x300xi32> to vector<4x1x300xi32>
    %15 = vector.broadcast %13 : vector<4x1x1xi32> to vector<4x1x300xi32>
    %16 = arith.cmpi slt, %14, %15 : vector<4x1x300xi32>
    %17 = arith.andi %12, %16 : vector<4x1x300xi1>
    %18 = vector.broadcast %5 : vector<1x80x1xi32> to vector<4x80x1xi32>
    %19 = vector.broadcast %8 : vector<4x1x1xi32> to vector<4x80x1xi32>
    %20 = arith.cmpi sge, %18, %19 : vector<4x80x1xi32>
    %21 = arith.addi %8, %9 : vector<4x1x1xi32>
    %22 = vector.broadcast %5 : vector<1x80x1xi32> to vector<4x80x1xi32>
    %23 = vector.broadcast %21 : vector<4x1x1xi32> to vector<4x80x1xi32>
    %24 = arith.cmpi slt, %22, %23 : vector<4x80x1xi32>
    %25 = arith.andi %20, %24 : vector<4x80x1xi1>
    %cst = arith.constant 0.000000e+00 : f32
    %26 = vector.shape_cast %25 : vector<4x80x1xi1> to vector<4x80x1xi1>
    %27 = vector.broadcast %26 : vector<4x80x1xi1> to vector<4x80x300xi1>
    %28 = vector.broadcast %cst : f32 to vector<4x80x300xf32>
    %29 = arith.select %27, %28, %0 : vector<4x80x300xi1>, vector<4x80x300xf32>
    %cst_14 = arith.constant 0.000000e+00 : f32
    %30 = vector.shape_cast %17 : vector<4x1x300xi1> to vector<4x1x300xi1>
    %31 = vector.broadcast %30 : vector<4x1x300xi1> to vector<4x80x300xi1>
    %32 = vector.broadcast %cst_14 : f32 to vector<4x80x300xf32>
    %33 = arith.select %31, %32, %29 : vector<4x80x300xi1>, vector<4x80x300xf32>
    %c0_15 = arith.constant 0 : index
    %c0_16 = arith.constant 0 : index
    %c0_17 = arith.constant 0 : index
    %34 = vector.load %arg7[%c0_15, %c0_16, %c0_17] : memref<4x80x300xf32, #tpu.memory_space<vmem>>, vector<4x80x300xf32>
    tpu.vector_store %arg7[%c0_15, %c0_16, %c0_17], %33 {strides = array<i32>} : memref<4x80x300xf32, #tpu.memory_space<vmem>>, vector<4x80x300xf32>,
    return
  }
  func.func @transform_0(%arg0: i32, %arg1: i32) -> (i32, i32, i32) {
    %c0_i32 = arith.constant 0 : i32
    %c0_i32_0 = arith.constant 0 : i32
    return %arg0, %c0_i32, %arg1 : i32, i32, i32
  }
  func.func @transform_1(%arg0: i32, %arg1: i32) -> (i32, i32, i32) {
    %c0_i32 = arith.constant 0 : i32
    %c0_i32_0 = arith.constant 0 : i32
    %c0_i32_1 = arith.constant 0 : i32
    return %arg0, %c0_i32, %c0_i32_0 : i32, i32, i32
  }
  func.func @transform_2(%arg0: i32, %arg1: i32) -> (i32, i32, i32) {
    %c0_i32 = arith.constant 0 : i32
    %c0_i32_0 = arith.constant 0 : i32
    %c0_i32_1 = arith.constant 0 : i32
    return %arg0, %c0_i32, %c0_i32_0 : i32, i32, i32
  }
  func.func @transform_3(%arg0: i32, %arg1: i32) -> (i32, i32, i32) {
    %c0_i32 = arith.constant 0 : i32
    %c0_i32_0 = arith.constant 0 : i32
    %c0_i32_1 = arith.constant 0 : i32
    return %arg0, %c0_i32, %c0_i32_0 : i32, i32, i32
  }
  func.func @transform_4(%arg0: i32, %arg1: i32) -> (i32, i32, i32) {
    %c0_i32 = arith.constant 0 : i32
    %c0_i32_0 = arith.constant 0 : i32
    %c0_i32_1 = arith.constant 0 : i32
    return %arg0, %c0_i32, %c0_i32_0 : i32, i32, i32
  }
  func.func @transform_5(%arg0: i32, %arg1: i32) -> (i32, i32, i32) {
    %c0_i32 = arith.constant 0 : i32
    %c0_i32_0 = arith.constant 0 : i32
    return %arg0, %c0_i32, %arg1 : i32, i32, i32
  }
}

</mosaic_0001>

<llo_original>
// kernel: tpu_custom_call.1
$region0: #{tpu_custom_call.1}
  #allocation0 [shape = 'u32[]', space=smem, size = 0x4, offset = 0x4, fixed_abs, tag = 'smem constant byte address 0x4 - core index']
  #allocation1 [shape = 'u32[72,128]{1,0:T(1,128)}', space=vmem, size = 0x9000, scoped, tag = 'internal scratch']
  %s0 = inlined_call_operand.hbm [shape: f32[4,80,300], index: 0, kind: input, shape index: {}]
  %s1 = inlined_call_operand.vmem [shape: s32[4,1,1], index: 1, kind: input, shape index: {}]
  %s2 = inlined_call_operand.vmem [shape: s32[4,1,1], index: 2, kind: input, shape index: {}]
  %s3 = inlined_call_operand.vmem [shape: s32[4,1,1], index: 3, kind: input, shape index: {}]
  %s4 = inlined_call_operand.vmem [shape: s32[4,1,1], index: 4, kind: input, shape index: {}]
  %s5 = inlined_call_operand.hbm [shape: f32[4,80,300], index: 5, kind: output, shape index: {}]
  %s6 = sld [smem:[#allocation0]]
  $region34: #{tpu_custom_call.1} parent=0
    _
  %s8 = ssub.s32 1, %s6
  %s9 = scalar_select 0, %s8, %s6
  $region1: #{tpu_custom_call.1} parent=0
    #allocation2 [shape = 'u8[491520]{0}', space=vmem, size = 0x78000, scoped, tag = 'input window, operand 0, single buffered']
    #allocation3 [shape = 's32[1]{0}', space=sflag, size = 0x4, scoped, tag = 'scoped memory for tpu_custom_call.1']
    #allocation4 [shape = 's32[1]{0}', space=sflag, size = 0x4, scoped, tag = 'scoped memory for tpu_custom_call.1']
    #allocation5 [shape = 'u8[491520]{0}', space=vmem, size = 0x78000, scoped, tag = 'output window, operand 0, single buffered']
    %10 = vsyncpa [#allocation3], 0
    %11 = vsyncpa [#allocation4], 0
    // Predicated region
    $region2: #{tpu_custom_call.1} parent=1 // pred_check
      _
    $region3: #{tpu_custom_call.1} parent=1 // pred_check_branch
      %13 = sbr.rel (0) target = $region5
    $region4: #{tpu_custom_call.1} parent=1 // pred_region
      %15 = vsyncadd [#allocation3], 0
      %s16 = sshll.u32 %s0, 4
      %s17 = int_to_ptr.hbm [resolvable:$true] %s16
      %s18 = sshll.u32 [#allocation2], 4
      %s19 = int_to_ptr.vmem [resolvable:$true] %s18
      %24 = dma.hbm_to_vmem [thread:$0]  %s17, 15360, %s19, [#allocation3], 384, 384, 24
    $region5: #{tpu_custom_call.1} parent=1 // pred_fallthru
      _
    // Predicated region
    $region6: #{tpu_custom_call.1} parent=1 // pred_check
      _
    $region7: #{tpu_custom_call.1} parent=1 // pred_check_branch
      %26 = sbr.rel (0) target = $region9
    $region8: #{tpu_custom_call.1} parent=1 // pred_region
      _
    $region9: #{tpu_custom_call.1} parent=1 // pred_fallthru
      _
    // Predicated region
    $region10: #{tpu_custom_call.1} parent=1 // pred_check
      _
    $region11: #{tpu_custom_call.1} parent=1 // pred_check_branch
      %28 = sbr.rel (0) target = $region13
    $region12: #{tpu_custom_call.1} parent=1 // pred_region
      _
    $region13: #{tpu_custom_call.1} parent=1 // pred_fallthru
      _
    // Predicated region
    $region14: #{tpu_custom_call.1} parent=1 // pred_check
      _
    $region15: #{tpu_custom_call.1} parent=1 // pred_check_branch
      %30 = sbr.rel (0) target = $region17
    $region16: #{tpu_custom_call.1} parent=1 // pred_region
      _
    $region17: #{tpu_custom_call.1} parent=1 // pred_fallthru
      _
    // Predicated region
    $region18: #{tpu_custom_call.1} parent=1 // pred_check
      _
    $region19: #{tpu_custom_call.1} parent=1 // pred_check_branch
      %32 = sbr.rel (0) target = $region21
    $region20: #{tpu_custom_call.1} parent=1 // pred_region
      _
    $region21: #{tpu_custom_call.1} parent=1 // pred_fallthru
      _
    // Predicated region
    $region22: #{tpu_custom_call.1} parent=1 // pred_check
      _
    $region23: #{tpu_custom_call.1} parent=1 // pred_check_branch
      %34 = sbr.rel (0) target = $region25
    $region24: #{tpu_custom_call.1} parent=1 // pred_region
      %36 = dma.done [#allocation3], 15360
    $region25: #{tpu_custom_call.1} parent=1 // pred_fallthru
      _
    %v37 = vld [vmem:[#allocation2] sm:$0xff]
    %v38 = vld [vmem:[#allocation2 + $0x8] sm:$0xff]
    %v39 = vld [vmem:[#allocation2 + $0x10] sm:$0xff]
    %v40 = vld [vmem:[#allocation2 + $0x18] sm:$0xff]
    %v41 = vld [vmem:[#allocation2 + $0x20] sm:$0xff]
    %v42 = vld [vmem:[#allocation2 + $0x28] sm:$0xff]
    %v43 = vld [vmem:[#allocation2 + $0x30] sm:$0xff]
    %v44 = vld [vmem:[#allocation2 + $0x38] sm:$0xff]
    %v45 = vld [vmem:[#allocation2 + $0x40] sm:$0xff]
    %v46 = vld [vmem:[#allocation2 + $0x48] sm:$0xff]
    %v47 = vld [vmem:[#allocation2 + $0x50] sm:$0xff]
    %v48 = vld [vmem:[#allocation2 + $0x58] sm:$0xff]
    %v49 = vld [vmem:[#allocation2 + $0x60] sm:$0xff]
    %v50 = vld [vmem:[#allocation2 + $0x68] sm:$0xff]
    %v51 = vld [vmem:[#allocation2 + $0x70] sm:$0xff]
    %v52 = vld [vmem:[#allocation2 + $0x78] sm:$0xff]
    %v53 = vld [vmem:[#allocation2 + $0x80] sm:$0xff]
    %v54 = vld [vmem:[#allocation2 + $0x88] sm:$0xff]
    %v55 = vld [vmem:[#allocation2 + $0x90] sm:$0xff]
    %v56 = vld [vmem:[#allocation2 + $0x98] sm:$0xff]
    %v57 = vld [vmem:[#allocation2 + $0xa0] sm:$0xff]
    %v58 = vld [vmem:[#allocation2 + $0xa8] sm:$0xff]
    %v59 = vld [vmem:[#allocation2 + $0xb0] sm:$0xff]
    %v60 = vld [vmem:[#allocation2 + $0xb8] sm:$0xff]
    %v61 = vld [vmem:[#allocation2 + $0xc0] sm:$0xff]
    %v62 = vld [vmem:[#allocation2 + $0xc8] sm:$0xff]
    %v63 = vld [vmem:[#allocation2 + $0xd0] sm:$0xff]
    %v64 = vld [vmem:[#allocation2 + $0xd8] sm:$0xff]
    %v65 = vld [vmem:[#allocation2 + $0xe0] sm:$0xff]
    %v66 = vld [vmem:[#allocation2 + $0xe8] sm:$0xff]
    %v67 = vld [vmem:[#allocation2 + $0xf0] sm:$0xff]
    %v68 = vld [vmem:[#allocation2 + $0xf8] sm:$0xff]
    %v69 = vld [vmem:[#allocation2 + $0x100] sm:$0xff]
    %v70 = vld [vmem:[#allocation2 + $0x108] sm:$0xff]
    %v71 = vld [vmem:[#allocation2 + $0x110] sm:$0xff]
    %v72 = vld [vmem:[#allocation2 + $0x118] sm:$0xff]
    %v73 = vld [vmem:[#allocation2 + $0x120] sm:$0xff]
    %v74 = vld [vmem:[#allocation2 + $0x128] sm:$0xff]
    %v75 = vld [vmem:[#allocation2 + $0x130] sm:$0xff]
    %v76 = vld [vmem:[#allocation2 + $0x138] sm:$0xff]
    %v77 = vld [vmem:[#allocation2 + $0x140] sm:$0xff]
    %v78 = vld [vmem:[#allocation2 + $0x148] sm:$0xff]
    %v79 = vld [vmem:[#allocation2 + $0x150] sm:$0xff]
    %v80 = vld [vmem:[#allocation2 + $0x158] sm:$0xff]
    %v81 = vld [vmem:[#allocation2 + $0x160] sm:$0xff]
    %v82 = vld [vmem:[#allocation2 + $0x168] sm:$0xff]
    %v83 = vld [vmem:[#allocation2 + $0x170] sm:$0xff]
    %v84 = vld [vmem:[#allocation2 + $0x178] sm:$0xff]
    %v85 = vld [vmem:[#allocation2 + $0x180] sm:$0xff]
    %v86 = vld [vmem:[#allocation2 + $0x188] sm:$0xff]
    %v87 = vld [vmem:[#allocation2 + $0x190] sm:$0xff]
    %v88 = vld [vmem:[#allocation2 + $0x198] sm:$0xff]
    %v89 = vld [vmem:[#allocation2 + $0x1a0] sm:$0xff]
    %v90 = vld [vmem:[#allocation2 + $0x1a8] sm:$0xff]
    %v91 = vld [vmem:[#allocation2 + $0x1b0] sm:$0xff]
    %v92 = vld [vmem:[#allocation2 + $0x1b8] sm:$0xff]
    %v93 = vld [vmem:[#allocation2 + $0x1c0] sm:$0xff]
    %v94 = vld [vmem:[#allocation2 + $0x1c8] sm:$0xff]
    %v95 = vld [vmem:[#allocation2 + $0x1d0] sm:$0xff]
    %v96 = vld [vmem:[#allocation2 + $0x1d8] sm:$0xff]
    %v97 = vld [vmem:[#allocation2 + $0x1e0] sm:$0xff]
    %v98 = vld [vmem:[#allocation2 + $0x1e8] sm:$0xff]
    %v99 = vld [vmem:[#allocation2 + $0x1f0] sm:$0xff]
    %v100 = vld [vmem:[#allocation2 + $0x1f8] sm:$0xff]
    %v101 = vld [vmem:[#allocation2 + $0x200] sm:$0xff]
    %v102 = vld [vmem:[#allocation2 + $0x208] sm:$0xff]
    %v103 = vld [vmem:[#allocation2 + $0x210] sm:$0xff]
    %v104 = vld [vmem:[#allocation2 + $0x218] sm:$0xff]
    %v105 = vld [vmem:[#allocation2 + $0x220] sm:$0xff]
    %v106 = vld [vmem:[#allocation2 + $0x228] sm:$0xff]
    %v107 = vld [vmem:[#allocation2 + $0x230] sm:$0xff]
    %v108 = vld [vmem:[#allocation2 + $0x238] sm:$0xff]
    %v109 = vld [vmem:[#allocation2 + $0x240] sm:$0xff]
    %v110 = vld [vmem:[#allocation2 + $0x248] sm:$0xff]
    %v111 = vld [vmem:[#allocation2 + $0x250] sm:$0xff]
    %v112 = vld [vmem:[#allocation2 + $0x258] sm:$0xff]
    %v113 = vld [vmem:[#allocation2 + $0x260] sm:$0xff]
    %v114 = vld [vmem:[#allocation2 + $0x268] sm:$0xff]
    %v115 = vld [vmem:[#allocation2 + $0x270] sm:$0xff]
    %v116 = vld [vmem:[#allocation2 + $0x278] sm:$0xff]
    %v117 = vld [vmem:[#allocation2 + $0x280] sm:$0xff]
    %v118 = vld [vmem:[#allocation2 + $0x288] sm:$0xff]
    %v119 = vld [vmem:[#allocation2 + $0x290] sm:$0xff]
    %v120 = vld [vmem:[#allocation2 + $0x298] sm:$0xff]
    %v121 = vld [vmem:[#allocation2 + $0x2a0] sm:$0xff]
    %v122 = vld [vmem:[#allocation2 + $0x2a8] sm:$0xff]
    %v123 = vld [vmem:[#allocation2 + $0x2b0] sm:$0xff]
    %v124 = vld [vmem:[#allocation2 + $0x2b8] sm:$0xff]
    %v125 = vld [vmem:[#allocation2 + $0x2c0] sm:$0xff]
    %v126 = vld [vmem:[#allocation2 + $0x2c8] sm:$0xff]
    %v127 = vld [vmem:[#allocation2 + $0x2d0] sm:$0xff]
    %v128 = vld [vmem:[#allocation2 + $0x2d8] sm:$0xff]
    %v129 = vld [vmem:[#allocation2 + $0x2e0] sm:$0xff]
    %v130 = vld [vmem:[#allocation2 + $0x2e8] sm:$0xff]
    %v131 = vld [vmem:[#allocation2 + $0x2f0] sm:$0xff]
    %v132 = vld [vmem:[#allocation2 + $0x2f8] sm:$0xff]
    %v133 = vld [vmem:[#allocation2 + $0x300] sm:$0xff]
    %v134 = vld [vmem:[#allocation2 + $0x308] sm:$0xff]
    %v135 = vld [vmem:[#allocation2 + $0x310] sm:$0xff]
    %v136 = vld [vmem:[#allocation2 + $0x318] sm:$0xff]
    %v137 = vld [vmem:[#allocation2 + $0x320] sm:$0xff]
    %v138 = vld [vmem:[#allocation2 + $0x328] sm:$0xff]
    %v139 = vld [vmem:[#allocation2 + $0x330] sm:$0xff]
    %v140 = vld [vmem:[#allocation2 + $0x338] sm:$0xff]
    %v141 = vld [vmem:[#allocation2 + $0x340] sm:$0xff]
    %v142 = vld [vmem:[#allocation2 + $0x348] sm:$0xff]
    %v143 = vld [vmem:[#allocation2 + $0x350] sm:$0xff]
    %v144 = vld [vmem:[#allocation2 + $0x358] sm:$0xff]
    %v145 = vld [vmem:[#allocation2 + $0x360] sm:$0xff]
    %v146 = vld [vmem:[#allocation2 + $0x368] sm:$0xff]
    %v147 = vld [vmem:[#allocation2 + $0x370] sm:$0xff]
    %v148 = vld [vmem:[#allocation2 + $0x378] sm:$0xff]
    %v149 = vld [vmem:[#allocation2 + $0x380] sm:$0xff]
    %v150 = vld [vmem:[#allocation2 + $0x388] sm:$0xff]
    %v151 = vld [vmem:[#allocation2 + $0x390] sm:$0xff]
    %v152 = vld [vmem:[#allocation2 + $0x398] sm:$0xff]
    %v153 = vld [vmem:[#allocation2 + $0x3a0] sm:$0xff]
    %v154 = vld [vmem:[#allocation2 + $0x3a8] sm:$0xff]
    %v155 = vld [vmem:[#allocation2 + $0x3b0] sm:$0xff]
    %v156 = vld [vmem:[#allocation2 + $0x3b8] sm:$0xff]
    %s157 = smul.u32 0, 300
    %v158 = vlaneseq
    %v159 = vand.u32 %v158, 127
    %v160 = vadd.s32 %v159, 128
    %v161 = vadd.s32 %v159, 256
    %v162 = vstv %s157
    %v163 = vadd.s32 %v162, %v159
    %v164 = vadd.s32 %v162, %v160
    %v165 = vadd.s32 %v162, %v161
    %v166 = vlaneseq
    %v167 = vshrl.u32 %v166, 7
    %v168 = vadd.s32 %v167, 8
    %v169 = vadd.s32 %v167, 16
    %v170 = vadd.s32 %v167, 24
    %v171 = vadd.s32 %v167, 32
    %v172 = vadd.s32 %v167, 40
    %v173 = vadd.s32 %v167, 48
    %v174 = vadd.s32 %v167, 56
    %v175 = vadd.s32 %v167, 64
    %v176 = vadd.s32 %v167, 72
    %v177 = vld [vmem:[%s1] sm:$0x1]
    %v178 = vld [vmem:[%s1 + $0x1] sm:$0x1]
    %v179 = vld [vmem:[%s1 + $0x2] sm:$0x1]
    %v180 = vld [vmem:[%s1 + $0x3] sm:$0x1]
    %v181 = vld [vmem:[%s2] sm:$0x1]
    %v182 = vld [vmem:[%s2 + $0x1] sm:$0x1]
    %v183 = vld [vmem:[%s2 + $0x2] sm:$0x1]
    %v184 = vld [vmem:[%s2 + $0x3] sm:$0x1]
    %v185 = vld [vmem:[%s3] sm:$0x1]
    %v186 = vld [vmem:[%s3 + $0x1] sm:$0x1]
    %v187 = vld [vmem:[%s3 + $0x2] sm:$0x1]
    %v188 = vld [vmem:[%s3 + $0x3] sm:$0x1]
    %v189 = vld [vmem:[%s4] sm:$0x1]
    %v190 = vld [vmem:[%s4 + $0x1] sm:$0x1]
    %v191 = vld [vmem:[%s4 + $0x2] sm:$0x1]
    %v192 = vld [vmem:[%s4 + $0x3] sm:$0x1]
    %193 = vset.pattern.permute.xlu0 0
    %194 = vperm.xlu0 %193, %v177
    %v195 = vpop.permute.xlu0 %194
    %v196 = vperm.slane %v195, 0
    %197 = vset.pattern.permute.xlu0 0
    %198 = vperm.xlu0 %197, %v178
    %v199 = vpop.permute.xlu0 %198
    %v200 = vperm.slane %v199, 0
    %201 = vset.pattern.permute.xlu0 0
    %202 = vperm.xlu0 %201, %v179
    %v203 = vpop.permute.xlu0 %202
    %v204 = vperm.slane %v203, 0
    %205 = vset.pattern.permute.xlu0 0
    %206 = vperm.xlu0 %205, %v180
    %v207 = vpop.permute.xlu0 %206
    %v208 = vperm.slane %v207, 0
    %vm209 = vcmp.ge.s32.totalorder %v163, %v196
    %vm210 = vcmp.ge.s32.totalorder %v164, %v196
    %vm211 = vcmp.ge.s32.totalorder %v165, %v196
    %vm212 = vcmp.ge.s32.totalorder %v163, %v200
    %vm213 = vcmp.ge.s32.totalorder %v164, %v200
    %vm214 = vcmp.ge.s32.totalorder %v165, %v200
    %vm215 = vcmp.ge.s32.totalorder %v163, %v204
    %vm216 = vcmp.ge.s32.totalorder %v164, %v204
    %vm217 = vcmp.ge.s32.totalorder %v165, %v204
    %vm218 = vcmp.ge.s32.totalorder %v163, %v208
    %vm219 = vcmp.ge.s32.totalorder %v164, %v208
    %vm220 = vcmp.ge.s32.totalorder %v165, %v208
    %v221 = vadd.s32 %v177, %v181
    %v222 = vadd.s32 %v178, %v182
    %v223 = vadd.s32 %v179, %v183
    %v224 = vadd.s32 %v180, %v184
    %225 = vset.pattern.permute.xlu0 0
    %226 = vperm.xlu0 %225, %v221
    %v227 = vpop.permute.xlu0 %226
    %v228 = vperm.slane %v227, 0
    %229 = vset.pattern.permute.xlu0 0
    %230 = vperm.xlu0 %229, %v222
    %v231 = vpop.permute.xlu0 %230
    %v232 = vperm.slane %v231, 0
    %233 = vset.pattern.permute.xlu0 0
    %234 = vperm.xlu0 %233, %v223
    %v235 = vpop.permute.xlu0 %234
    %v236 = vperm.slane %v235, 0
    %237 = vset.pattern.permute.xlu0 0
    %238 = vperm.xlu0 %237, %v224
    %v239 = vpop.permute.xlu0 %238
    %v240 = vperm.slane %v239, 0
    %vm241 = vcmp.lt.s32.totalorder %v163, %v228
    %vm242 = vcmp.lt.s32.totalorder %v164, %v228
    %vm243 = vcmp.lt.s32.totalorder %v165, %v228
    %vm244 = vcmp.lt.s32.totalorder %v163, %v232
    %vm245 = vcmp.lt.s32.totalorder %v164, %v232
    %vm246 = vcmp.lt.s32.totalorder %v165, %v232
    %vm247 = vcmp.lt.s32.totalorder %v163, %v236
    %vm248 = vcmp.lt.s32.totalorder %v164, %v236
    %vm249 = vcmp.lt.s32.totalorder %v165, %v236
    %vm250 = vcmp.lt.s32.totalorder %v163, %v240
    %vm251 = vcmp.lt.s32.totalorder %v164, %v240
    %vm252 = vcmp.lt.s32.totalorder %v165, %v240
    %vm253 = vmand %vm209, %vm241
    %vm254 = vmand %vm210, %vm242
    %vm255 = vmand %vm211, %vm243
    %vm256 = vmand %vm212, %vm244
    %vm257 = vmand %vm213, %vm245
    %vm258 = vmand %vm214, %vm246
    %vm259 = vmand %vm215, %vm247
    %vm260 = vmand %vm216, %vm248
    %vm261 = vmand %vm217, %vm249
    %vm262 = vmand %vm218, %vm250
    %vm263 = vmand %vm219, %vm251
    %vm264 = vmand %vm220, %vm252
    %v265 = vperm.slane %v185, 0
    %v266 = vperm.slane %v186, 0
    %v267 = vperm.slane %v187, 0
    %v268 = vperm.slane %v188, 0
    %vm269 = vcmp.ge.s32.totalorder %v167, %v265
    %vm270 = vcmp.ge.s32.totalorder %v168, %v265
    %vm271 = vcmp.ge.s32.totalorder %v169, %v265
    %vm272 = vcmp.ge.s32.totalorder %v170, %v265
    %vm273 = vcmp.ge.s32.totalorder %v171, %v265
    %vm274 = vcmp.ge.s32.totalorder %v172, %v265
    %vm275 = vcmp.ge.s32.totalorder %v173, %v265
    %vm276 = vcmp.ge.s32.totalorder %v174, %v265
    %vm277 = vcmp.ge.s32.totalorder %v175, %v265
    %vm278 = vcmp.ge.s32.totalorder %v176, %v265
    %vm279 = vcmp.ge.s32.totalorder %v167, %v266
    %vm280 = vcmp.ge.s32.totalorder %v168, %v266
    %vm281 = vcmp.ge.s32.totalorder %v169, %v266
    %vm282 = vcmp.ge.s32.totalorder %v170, %v266
    %vm283 = vcmp.ge.s32.totalorder %v171, %v266
    %vm284 = vcmp.ge.s32.totalorder %v172, %v266
    %vm285 = vcmp.ge.s32.totalorder %v173, %v266
    %vm286 = vcmp.ge.s32.totalorder %v174, %v266
    %vm287 = vcmp.ge.s32.totalorder %v175, %v266
    %vm288 = vcmp.ge.s32.totalorder %v176, %v266
    %vm289 = vcmp.ge.s32.totalorder %v167, %v267
    %vm290 = vcmp.ge.s32.totalorder %v168, %v267
    %vm291 = vcmp.ge.s32.totalorder %v169, %v267
    %vm292 = vcmp.ge.s32.totalorder %v170, %v267
    %vm293 = vcmp.ge.s32.totalorder %v171, %v267
    %vm294 = vcmp.ge.s32.totalorder %v172, %v267
    %vm295 = vcmp.ge.s32.totalorder %v173, %v267
    %vm296 = vcmp.ge.s32.totalorder %v174, %v267
    %vm297 = vcmp.ge.s32.totalorder %v175, %v267
    %vm298 = vcmp.ge.s32.totalorder %v176, %v267
    %vm299 = vcmp.ge.s32.totalorder %v167, %v268
    %vm300 = vcmp.ge.s32.totalorder %v168, %v268
    %vm301 = vcmp.ge.s32.totalorder %v169, %v268
    %vm302 = vcmp.ge.s32.totalorder %v170, %v268
    %vm303 = vcmp.ge.s32.totalorder %v171, %v268
    %vm304 = vcmp.ge.s32.totalorder %v172, %v268
    %vm305 = vcmp.ge.s32.totalorder %v173, %v268
    %vm306 = vcmp.ge.s32.totalorder %v174, %v268
    %vm307 = vcmp.ge.s32.totalorder %v175, %v268
    %vm308 = vcmp.ge.s32.totalorder %v176, %v268
    %v309 = vadd.s32 %v185, %v189
    %v310 = vadd.s32 %v186, %v190
    %v311 = vadd.s32 %v187, %v191
    %v312 = vadd.s32 %v188, %v192
    %v313 = vperm.slane %v309, 0
    %v314 = vperm.slane %v310, 0
    %v315 = vperm.slane %v311, 0
    %v316 = vperm.slane %v312, 0
    %vm317 = vcmp.lt.s32.totalorder %v167, %v313
    %vm318 = vcmp.lt.s32.totalorder %v168, %v313
    %vm319 = vcmp.lt.s32.totalorder %v169, %v313
    %vm320 = vcmp.lt.s32.totalorder %v170, %v313
    %vm321 = vcmp.lt.s32.totalorder %v171, %v313
    %vm322 = vcmp.lt.s32.totalorder %v172, %v313
    %vm323 = vcmp.lt.s32.totalorder %v173, %v313
    %vm324 = vcmp.lt.s32.totalorder %v174, %v313
    %vm325 = vcmp.lt.s32.totalorder %v175, %v313
    %vm326 = vcmp.lt.s32.totalorder %v176, %v313
    %vm327 = vcmp.lt.s32.totalorder %v167, %v314
    %vm328 = vcmp.lt.s32.totalorder %v168, %v314
    %vm329 = vcmp.lt.s32.totalorder %v169, %v314
    %vm330 = vcmp.lt.s32.totalorder %v170, %v314
    %vm331 = vcmp.lt.s32.totalorder %v171, %v314
    %vm332 = vcmp.lt.s32.totalorder %v172, %v314
    %vm333 = vcmp.lt.s32.totalorder %v173, %v314
    %vm334 = vcmp.lt.s32.totalorder %v174, %v314
    %vm335 = vcmp.lt.s32.totalorder %v175, %v314
    %vm336 = vcmp.lt.s32.totalorder %v176, %v314
    %vm337 = vcmp.lt.s32.totalorder %v167, %v315
    %vm338 = vcmp.lt.s32.totalorder %v168, %v315
    %vm339 = vcmp.lt.s32.totalorder %v169, %v315
    %vm340 = vcmp.lt.s32.totalorder %v170, %v315
    %vm341 = vcmp.lt.s32.totalorder %v171, %v315
    %vm342 = vcmp.lt.s32.totalorder %v172, %v315
    %vm343 = vcmp.lt.s32.totalorder %v173, %v315
    %vm344 = vcmp.lt.s32.totalorder %v174, %v315
    %vm345 = vcmp.lt.s32.totalorder %v175, %v315
    %vm346 = vcmp.lt.s32.totalorder %v176, %v315
    %vm347 = vcmp.lt.s32.totalorder %v167, %v316
    %vm348 = vcmp.lt.s32.totalorder %v168, %v316
    %vm349 = vcmp.lt.s32.totalorder %v169, %v316
    %vm350 = vcmp.lt.s32.totalorder %v170, %v316
    %vm351 = vcmp.lt.s32.totalorder %v171, %v316
    %vm352 = vcmp.lt.s32.totalorder %v172, %v316
    %vm353 = vcmp.lt.s32.totalorder %v173, %v316
    %vm354 = vcmp.lt.s32.totalorder %v174, %v316
    %vm355 = vcmp.lt.s32.totalorder %v175, %v316
    %vm356 = vcmp.lt.s32.totalorder %v176, %v316
    %vm357 = vmand %vm269, %vm317
    %vm358 = vmand %vm270, %vm318
    %vm359 = vmand %vm271, %vm319
    %vm360 = vmand %vm272, %vm320
    %vm361 = vmand %vm273, %vm321
    %vm362 = vmand %vm274, %vm322
    %vm363 = vmand %vm275, %vm323
    %vm364 = vmand %vm276, %vm324
    %vm365 = vmand %vm277, %vm325
    %vm366 = vmand %vm278, %vm326
    %vm367 = vmand %vm279, %vm327
    %vm368 = vmand %vm280, %vm328
    %vm369 = vmand %vm281, %vm329
    %vm370 = vmand %vm282, %vm330
    %vm371 = vmand %vm283, %vm331
    %vm372 = vmand %vm284, %vm332
    %vm373 = vmand %vm285, %vm333
    %vm374 = vmand %vm286, %vm334
    %vm375 = vmand %vm287, %vm335
    %vm376 = vmand %vm288, %vm336
    %vm377 = vmand %vm289, %vm337
    %vm378 = vmand %vm290, %vm338
    %vm379 = vmand %vm291, %vm339
    %vm380 = vmand %vm292, %vm340
    %vm381 = vmand %vm293, %vm341
    %vm382 = vmand %vm294, %vm342
    %vm383 = vmand %vm295, %vm343
    %vm384 = vmand %vm296, %vm344
    %vm385 = vmand %vm297, %vm345
    %vm386 = vmand %vm298, %vm346
    %vm387 = vmand %vm299, %vm347
    %vm388 = vmand %vm300, %vm348
    %vm389 = vmand %vm301, %vm349
    %vm390 = vmand %vm302, %vm350
    %vm391 = vmand %vm303, %vm351
    %vm392 = vmand %vm304, %vm352
    %vm393 = vmand %vm305, %vm353
    %vm394 = vmand %vm306, %vm354
    %vm395 = vmand %vm307, %vm355
    %vm396 = vmand %vm308, %vm356
    %v397 = vsel %vm357, 1, 0
    %v398 = vsel %vm358, 1, 0
    %v399 = vsel %vm359, 1, 0
    %v400 = vsel %vm360, 1, 0
    %v401 = vsel %vm361, 1, 0
    %v402 = vsel %vm362, 1, 0
    %v403 = vsel %vm363, 1, 0
    %v404 = vsel %vm364, 1, 0
    %v405 = vsel %vm365, 1, 0
    %v406 = vsel %vm366, 1, 0
    %v407 = vsel %vm367, 1, 0
    %v408 = vsel %vm368, 1, 0
    %v409 = vsel %vm369, 1, 0
    %v410 = vsel %vm370, 1, 0
    %v411 = vsel %vm371, 1, 0
    %v412 = vsel %vm372, 1, 0
    %v413 = vsel %vm373, 1, 0
    %v414 = vsel %vm374, 1, 0
    %v415 = vsel %vm375, 1, 0
    %v416 = vsel %vm376, 1, 0
    %v417 = vsel %vm377, 1, 0
    %v418 = vsel %vm378, 1, 0
    %v419 = vsel %vm379, 1, 0
    %v420 = vsel %vm380, 1, 0
    %v421 = vsel %vm381, 1, 0
    %v422 = vsel %vm382, 1, 0
    %v423 = vsel %vm383, 1, 0
    %v424 = vsel %vm384, 1, 0
    %v425 = vsel %vm385, 1, 0
    %v426 = vsel %vm386, 1, 0
    %v427 = vsel %vm387, 1, 0
    %v428 = vsel %vm388, 1, 0
    %v429 = vsel %vm389, 1, 0
    %v430 = vsel %vm390, 1, 0
    %v431 = vsel %vm391, 1, 0
    %v432 = vsel %vm392, 1, 0
    %v433 = vsel %vm393, 1, 0
    %v434 = vsel %vm394, 1, 0
    %v435 = vsel %vm395, 1, 0
    %v436 = vsel %vm396, 1, 0
    %437 = vset.pattern.permute.xlu0 0
    %438 = vperm.xlu0 %437, %v397
    %v439 = vpop.permute.xlu0 %438
    %440 = vset.pattern.permute.xlu0 0
    %441 = vperm.xlu0 %440, %v398
    %v442 = vpop.permute.xlu0 %441
    %443 = vset.pattern.permute.xlu0 0
    %444 = vperm.xlu0 %443, %v399
    %v445 = vpop.permute.xlu0 %444
    %446 = vset.pattern.permute.xlu0 0
    %447 = vperm.xlu0 %446, %v400
    %v448 = vpop.permute.xlu0 %447
    %449 = vset.pattern.permute.xlu0 0
    %450 = vperm.xlu0 %449, %v401
    %v451 = vpop.permute.xlu0 %450
    %452 = vset.pattern.permute.xlu0 0
    %453 = vperm.xlu0 %452, %v402
    %v454 = vpop.permute.xlu0 %453
    %455 = vset.pattern.permute.xlu0 0
    %456 = vperm.xlu0 %455, %v403
    %v457 = vpop.permute.xlu0 %456
    %458 = vset.pattern.permute.xlu0 0
    %459 = vperm.xlu0 %458, %v404
    %v460 = vpop.permute.xlu0 %459
    %461 = vset.pattern.permute.xlu0 0
    %462 = vperm.xlu0 %461, %v405
    %v463 = vpop.permute.xlu0 %462
    %464 = vset.pattern.permute.xlu0 0
    %465 = vperm.xlu0 %464, %v406
    %v466 = vpop.permute.xlu0 %465
    %467 = vset.pattern.permute.xlu0 0
    %468 = vperm.xlu0 %467, %v407
    %v469 = vpop.permute.xlu0 %468
    %470 = vset.pattern.permute.xlu0 0
    %471 = vperm.xlu0 %470, %v408
    %v472 = vpop.permute.xlu0 %471
    %473 = vset.pattern.permute.xlu0 0
    %474 = vperm.xlu0 %473, %v409
    %v475 = vpop.permute.xlu0 %474
    %476 = vset.pattern.permute.xlu0 0
    %477 = vperm.xlu0 %476, %v410
    %v478 = vpop.permute.xlu0 %477
    %479 = vset.pattern.permute.xlu0 0
    %480 = vperm.xlu0 %479, %v411
    %v481 = vpop.permute.xlu0 %480
    %482 = vset.pattern.permute.xlu0 0
    %483 = vperm.xlu0 %482, %v412
    %v484 = vpop.permute.xlu0 %483
    %485 = vset.pattern.permute.xlu0 0
    %486 = vperm.xlu0 %485, %v413
    %v487 = vpop.permute.xlu0 %486
    %488 = vset.pattern.permute.xlu0 0
    %489 = vperm.xlu0 %488, %v414
    %v490 = vpop.permute.xlu0 %489
    %491 = vset.pattern.permute.xlu0 0
    %492 = vperm.xlu0 %491, %v415
    %v493 = vpop.permute.xlu0 %492
    %494 = vset.pattern.permute.xlu0 0
    %495 = vperm.xlu0 %494, %v416
    %v496 = vpop.permute.xlu0 %495
    %497 = vset.pattern.permute.xlu0 0
    %498 = vperm.xlu0 %497, %v417
    %v499 = vpop.permute.xlu0 %498
    %500 = vset.pattern.permute.xlu0 0
    %501 = vperm.xlu0 %500, %v418
    %v502 = vpop.permute.xlu0 %501
    %503 = vset.pattern.permute.xlu0 0
    %504 = vperm.xlu0 %503, %v419
    %v505 = vpop.permute.xlu0 %504
    %506 = vset.pattern.permute.xlu0 0
    %507 = vperm.xlu0 %506, %v420
    %v508 = vpop.permute.xlu0 %507
    %509 = vset.pattern.permute.xlu0 0
    %510 = vperm.xlu0 %509, %v421
    %v511 = vpop.permute.xlu0 %510
    %512 = vset.pattern.permute.xlu0 0
    %513 = vperm.xlu0 %512, %v422
    %v514 = vpop.permute.xlu0 %513
    %515 = vset.pattern.permute.xlu0 0
    %516 = vperm.xlu0 %515, %v423
    %v517 = vpop.permute.xlu0 %516
    %518 = vset.pattern.permute.xlu0 0
    %519 = vperm.xlu0 %518, %v424
    %v520 = vpop.permute.xlu0 %519
    %521 = vset.pattern.permute.xlu0 0
    %522 = vperm.xlu0 %521, %v425
    %v523 = vpop.permute.xlu0 %522
    %524 = vset.pattern.permute.xlu0 0
    %525 = vperm.xlu0 %524, %v426
    %v526 = vpop.permute.xlu0 %525
    %527 = vset.pattern.permute.xlu0 0
    %528 = vperm.xlu0 %527, %v427
    %v529 = vpop.permute.xlu0 %528
    %530 = vset.pattern.permute.xlu0 0
    %531 = vperm.xlu0 %530, %v428
    %v532 = vpop.permute.xlu0 %531
    %533 = vset.pattern.permute.xlu0 0
    %534 = vperm.xlu0 %533, %v429
    %v535 = vpop.permute.xlu0 %534
    %536 = vset.pattern.permute.xlu0 0
    %537 = vperm.xlu0 %536, %v430
    %v538 = vpop.permute.xlu0 %537
    %539 = vset.pattern.permute.xlu0 0
    %540 = vperm.xlu0 %539, %v431
    %v541 = vpop.permute.xlu0 %540
    %542 = vset.pattern.permute.xlu0 0
    %543 = vperm.xlu0 %542, %v432
    %v544 = vpop.permute.xlu0 %543
    %545 = vset.pattern.permute.xlu0 0
    %546 = vperm.xlu0 %545, %v433
    %v547 = vpop.permute.xlu0 %546
    %548 = vset.pattern.permute.xlu0 0
    %549 = vperm.xlu0 %548, %v434
    %v550 = vpop.permute.xlu0 %549
    %551 = vset.pattern.permute.xlu0 0
    %552 = vperm.xlu0 %551, %v435
    %v553 = vpop.permute.xlu0 %552
    %554 = vset.pattern.permute.xlu0 0
    %555 = vperm.xlu0 %554, %v436
    %v556 = vpop.permute.xlu0 %555
    %vm557 = vcmp.eq.s32.totalorder %v439, 1
    %vm558 = vcmp.eq.s32.totalorder %v442, 1
    %vm559 = vcmp.eq.s32.totalorder %v445, 1
    %vm560 = vcmp.eq.s32.totalorder %v448, 1
    %vm561 = vcmp.eq.s32.totalorder %v451, 1
    %vm562 = vcmp.eq.s32.totalorder %v454, 1
    %vm563 = vcmp.eq.s32.totalorder %v457, 1
    %vm564 = vcmp.eq.s32.totalorder %v460, 1
    %vm565 = vcmp.eq.s32.totalorder %v463, 1
    %vm566 = vcmp.eq.s32.totalorder %v466, 1
    %vm567 = vcmp.eq.s32.totalorder %v469, 1
    %vm568 = vcmp.eq.s32.totalorder %v472, 1
    %vm569 = vcmp.eq.s32.totalorder %v475, 1
    %vm570 = vcmp.eq.s32.totalorder %v478, 1
    %vm571 = vcmp.eq.s32.totalorder %v481, 1
    %vm572 = vcmp.eq.s32.totalorder %v484, 1
    %vm573 = vcmp.eq.s32.totalorder %v487, 1
    %vm574 = vcmp.eq.s32.totalorder %v490, 1
    %vm575 = vcmp.eq.s32.totalorder %v493, 1
    %vm576 = vcmp.eq.s32.totalorder %v496, 1
    %vm577 = vcmp.eq.s32.totalorder %v499, 1
    %vm578 = vcmp.eq.s32.totalorder %v502, 1
    %vm579 = vcmp.eq.s32.totalorder %v505, 1
    %vm580 = vcmp.eq.s32.totalorder %v508, 1
    %vm581 = vcmp.eq.s32.totalorder %v511, 1
    %vm582 = vcmp.eq.s32.totalorder %v514, 1
    %vm583 = vcmp.eq.s32.totalorder %v517, 1
    %vm584 = vcmp.eq.s32.totalorder %v520, 1
    %vm585 = vcmp.eq.s32.totalorder %v523, 1
    %vm586 = vcmp.eq.s32.totalorder %v526, 1
    %vm587 = vcmp.eq.s32.totalorder %v529, 1
    %vm588 = vcmp.eq.s32.totalorder %v532, 1
    %vm589 = vcmp.eq.s32.totalorder %v535, 1
    %vm590 = vcmp.eq.s32.totalorder %v538, 1
    %vm591 = vcmp.eq.s32.totalorder %v541, 1
    %vm592 = vcmp.eq.s32.totalorder %v544, 1
    %vm593 = vcmp.eq.s32.totalorder %v547, 1
    %vm594 = vcmp.eq.s32.totalorder %v550, 1
    %vm595 = vcmp.eq.s32.totalorder %v553, 1
    %vm596 = vcmp.eq.s32.totalorder %v556, 1
    %v597 = vsel %vm557, 0.0, %v37
    %v598 = vsel %vm557, 0.0, %v38
    %v599 = vsel %vm557, 0.0, %v39
    %v600 = vsel %vm558, 0.0, %v40
    %v601 = vsel %vm558, 0.0, %v41
    %v602 = vsel %vm558, 0.0, %v42
    %v603 = vsel %vm559, 0.0, %v43
    %v604 = vsel %vm559, 0.0, %v44
    %v605 = vsel %vm559, 0.0, %v45
    %v606 = vsel %vm560, 0.0, %v46
    %v607 = vsel %vm560, 0.0, %v47
    %v608 = vsel %vm560, 0.0, %v48
    %v609 = vsel %vm561, 0.0, %v49
    %v610 = vsel %vm561, 0.0, %v50
    %v611 = vsel %vm561, 0.0, %v51
    %v612 = vsel %vm562, 0.0, %v52
    %v613 = vsel %vm562, 0.0, %v53
    %v614 = vsel %vm562, 0.0, %v54
    %v615 = vsel %vm563, 0.0, %v55
    %v616 = vsel %vm563, 0.0, %v56
    %v617 = vsel %vm563, 0.0, %v57
    %v618 = vsel %vm564, 0.0, %v58
    %v619 = vsel %vm564, 0.0, %v59
    %v620 = vsel %vm564, 0.0, %v60
    %v621 = vsel %vm565, 0.0, %v61
    %v622 = vsel %vm565, 0.0, %v62
    %v623 = vsel %vm565, 0.0, %v63
    %v624 = vsel %vm566, 0.0, %v64
    %v625 = vsel %vm566, 0.0, %v65
    %v626 = vsel %vm566, 0.0, %v66
    %v627 = vsel %vm567, 0.0, %v67
    %v628 = vsel %vm567, 0.0, %v68
    %v629 = vsel %vm567, 0.0, %v69
    %v630 = vsel %vm568, 0.0, %v70
    %v631 = vsel %vm568, 0.0, %v71
    %v632 = vsel %vm568, 0.0, %v72
    %v633 = vsel %vm569, 0.0, %v73
    %v634 = vsel %vm569, 0.0, %v74
    %v635 = vsel %vm569, 0.0, %v75
    %v636 = vsel %vm570, 0.0, %v76
    %v637 = vsel %vm570, 0.0, %v77
    %v638 = vsel %vm570, 0.0, %v78
    %v639 = vsel %vm571, 0.0, %v79
    %v640 = vsel %vm571, 0.0, %v80
    %v641 = vsel %vm571, 0.0, %v81
    %v642 = vsel %vm572, 0.0, %v82
    %v643 = vsel %vm572, 0.0, %v83
    %v644 = vsel %vm572, 0.0, %v84
    %v645 = vsel %vm573, 0.0, %v85
    %v646 = vsel %vm573, 0.0, %v86
    %v647 = vsel %vm573, 0.0, %v87
    %v648 = vsel %vm574, 0.0, %v88
    %v649 = vsel %vm574, 0.0, %v89
    %v650 = vsel %vm574, 0.0, %v90
    %v651 = vsel %vm575, 0.0, %v91
    %v652 = vsel %vm575, 0.0, %v92
    %v653 = vsel %vm575, 0.0, %v93
    %v654 = vsel %vm576, 0.0, %v94
    %v655 = vsel %vm576, 0.0, %v95
    %v656 = vsel %vm576, 0.0, %v96
    %v657 = vsel %vm577, 0.0, %v97
    %v658 = vsel %vm577, 0.0, %v98
    %v659 = vsel %vm577, 0.0, %v99
    %v660 = vsel %vm578, 0.0, %v100
    %v661 = vsel %vm578, 0.0, %v101
    %v662 = vsel %vm578, 0.0, %v102
    %v663 = vsel %vm579, 0.0, %v103
    %v664 = vsel %vm579, 0.0, %v104
    %v665 = vsel %vm579, 0.0, %v105
    %v666 = vsel %vm580, 0.0, %v106
    %v667 = vsel %vm580, 0.0, %v107
    %v668 = vsel %vm580, 0.0, %v108
    %v669 = vsel %vm581, 0.0, %v109
    %v670 = vsel %vm581, 0.0, %v110
    %v671 = vsel %vm581, 0.0, %v111
    %v672 = vsel %vm582, 0.0, %v112
    %v673 = vsel %vm582, 0.0, %v113
    %v674 = vsel %vm582, 0.0, %v114
    %v675 = vsel %vm583, 0.0, %v115
    %v676 = vsel %vm583, 0.0, %v116
    %v677 = vsel %vm583, 0.0, %v117
    %v678 = vsel %vm584, 0.0, %v118
    %v679 = vsel %vm584, 0.0, %v119
    %v680 = vsel %vm584, 0.0, %v120
    %v681 = vsel %vm585, 0.0, %v121
    %v682 = vsel %vm585, 0.0, %v122
    %v683 = vsel %vm585, 0.0, %v123
    %v684 = vsel %vm586, 0.0, %v124
    %v685 = vsel %vm586, 0.0, %v125
    %v686 = vsel %vm586, 0.0, %v126
    %v687 = vsel %vm587, 0.0, %v127
    %v688 = vsel %vm587, 0.0, %v128
    %v689 = vsel %vm587, 0.0, %v129
    %v690 = vsel %vm588, 0.0, %v130
    %v691 = vsel %vm588, 0.0, %v131
    %v692 = vsel %vm588, 0.0, %v132
    %v693 = vsel %vm589, 0.0, %v133
    %v694 = vsel %vm589, 0.0, %v134
    %v695 = vsel %vm589, 0.0, %v135
    %v696 = vsel %vm590, 0.0, %v136
    %v697 = vsel %vm590, 0.0, %v137
    %v698 = vsel %vm590, 0.0, %v138
    %v699 = vsel %vm591, 0.0, %v139
    %v700 = vsel %vm591, 0.0, %v140
    %v701 = vsel %vm591, 0.0, %v141
    %v702 = vsel %vm592, 0.0, %v142
    %v703 = vsel %vm592, 0.0, %v143
    %v704 = vsel %vm592, 0.0, %v144
    %v705 = vsel %vm593, 0.0, %v145
    %v706 = vsel %vm593, 0.0, %v146
    %v707 = vsel %vm593, 0.0, %v147
    %v708 = vsel %vm594, 0.0, %v148
    %v709 = vsel %vm594, 0.0, %v149
    %v710 = vsel %vm594, 0.0, %v150
    %v711 = vsel %vm595, 0.0, %v151
    %v712 = vsel %vm595, 0.0, %v152
    %v713 = vsel %vm595, 0.0, %v153
    %v714 = vsel %vm596, 0.0, %v154
    %v715 = vsel %vm596, 0.0, %v155
    %v716 = vsel %vm596, 0.0, %v156
    %v717 = vsel %vm253, 1, 0
    %v718 = vsel %vm254, 1, 0
    %v719 = vsel %vm255, 1, 0
    %v720 = vsel %vm256, 1, 0
    %v721 = vsel %vm257, 1, 0
    %v722 = vsel %vm258, 1, 0
    %v723 = vsel %vm259, 1, 0
    %v724 = vsel %vm260, 1, 0
    %v725 = vsel %vm261, 1, 0
    %v726 = vsel %vm262, 1, 0
    %v727 = vsel %vm263, 1, 0
    %v728 = vsel %vm264, 1, 0
    %vm729 = vcmp.eq.s32.totalorder %v717, 1
    %vm730 = vcmp.eq.s32.totalorder %v718, 1
    %vm731 = vcmp.eq.s32.totalorder %v719, 1
    %vm732 = vcmp.eq.s32.totalorder %v720, 1
    %vm733 = vcmp.eq.s32.totalorder %v721, 1
    %vm734 = vcmp.eq.s32.totalorder %v722, 1
    %vm735 = vcmp.eq.s32.totalorder %v723, 1
    %vm736 = vcmp.eq.s32.totalorder %v724, 1
    %vm737 = vcmp.eq.s32.totalorder %v725, 1
    %vm738 = vcmp.eq.s32.totalorder %v726, 1
    %vm739 = vcmp.eq.s32.totalorder %v727, 1
    %vm740 = vcmp.eq.s32.totalorder %v728, 1
    %v741 = vsel %vm729, 0.0, %v597
    %v742 = vsel %vm730, 0.0, %v598
    %v743 = vsel %vm731, 0.0, %v599
    %v744 = vsel %vm729, 0.0, %v600
    %v745 = vsel %vm730, 0.0, %v601
    %v746 = vsel %vm731, 0.0, %v602
    %v747 = vsel %vm729, 0.0, %v603
    %v748 = vsel %vm730, 0.0, %v604
    %v749 = vsel %vm731, 0.0, %v605
    %v750 = vsel %vm729, 0.0, %v606
    %v751 = vsel %vm730, 0.0, %v607
    %v752 = vsel %vm731, 0.0, %v608
    %v753 = vsel %vm729, 0.0, %v609
    %v754 = vsel %vm730, 0.0, %v610
    %v755 = vsel %vm731, 0.0, %v611
    %v756 = vsel %vm729, 0.0, %v612
    %v757 = vsel %vm730, 0.0, %v613
    %v758 = vsel %vm731, 0.0, %v614
    %v759 = vsel %vm729, 0.0, %v615
    %v760 = vsel %vm730, 0.0, %v616
    %v761 = vsel %vm731, 0.0, %v617
    %v762 = vsel %vm729, 0.0, %v618
    %v763 = vsel %vm730, 0.0, %v619
    %v764 = vsel %vm731, 0.0, %v620
    %v765 = vsel %vm729, 0.0, %v621
    %v766 = vsel %vm730, 0.0, %v622
    %v767 = vsel %vm731, 0.0, %v623
    %v768 = vsel %vm729, 0.0, %v624
    %v769 = vsel %vm730, 0.0, %v625
    %v770 = vsel %vm731, 0.0, %v626
    %v771 = vsel %vm732, 0.0, %v627
    %v772 = vsel %vm733, 0.0, %v628
    %v773 = vsel %vm734, 0.0, %v629
    %v774 = vsel %vm732, 0.0, %v630
    %v775 = vsel %vm733, 0.0, %v631
    %v776 = vsel %vm734, 0.0, %v632
    %v777 = vsel %vm732, 0.0, %v633
    %v778 = vsel %vm733, 0.0, %v634
    %v779 = vsel %vm734, 0.0, %v635
    %v780 = vsel %vm732, 0.0, %v636
    %v781 = vsel %vm733, 0.0, %v637
    %v782 = vsel %vm734, 0.0, %v638
    %v783 = vsel %vm732, 0.0, %v639
    %v784 = vsel %vm733, 0.0, %v640
    %v785 = vsel %vm734, 0.0, %v641
    %v786 = vsel %vm732, 0.0, %v642
    %v787 = vsel %vm733, 0.0, %v643
    %v788 = vsel %vm734, 0.0, %v644
    %v789 = vsel %vm732, 0.0, %v645
    %v790 = vsel %vm733, 0.0, %v646
    %v791 = vsel %vm734, 0.0, %v647
    %v792 = vsel %vm732, 0.0, %v648
    %v793 = vsel %vm733, 0.0, %v649
    %v794 = vsel %vm734, 0.0, %v650
    %v795 = vsel %vm732, 0.0, %v651
    %v796 = vsel %vm733, 0.0, %v652
    %v797 = vsel %vm734, 0.0, %v653
    %v798 = vsel %vm732, 0.0, %v654
    %v799 = vsel %vm733, 0.0, %v655
    %v800 = vsel %vm734, 0.0, %v656
    %v801 = vsel %vm735, 0.0, %v657
    %v802 = vsel %vm736, 0.0, %v658
    %v803 = vsel %vm737, 0.0, %v659
    %v804 = vsel %vm735, 0.0, %v660
    %v805 = vsel %vm736, 0.0, %v661
    %v806 = vsel %vm737, 0.0, %v662
    %v807 = vsel %vm735, 0.0, %v663
    %v808 = vsel %vm736, 0.0, %v664
    %v809 = vsel %vm737, 0.0, %v665
    %v810 = vsel %vm735, 0.0, %v666
    %v811 = vsel %vm736, 0.0, %v667
    %v812 = vsel %vm737, 0.0, %v668
    %v813 = vsel %vm735, 0.0, %v669
    %v814 = vsel %vm736, 0.0, %v670
    %v815 = vsel %vm737, 0.0, %v671
    %v816 = vsel %vm735, 0.0, %v672
    %v817 = vsel %vm736, 0.0, %v673
    %v818 = vsel %vm737, 0.0, %v674
    %v819 = vsel %vm735, 0.0, %v675
    %v820 = vsel %vm736, 0.0, %v676
    %v821 = vsel %vm737, 0.0, %v677
    %v822 = vsel %vm735, 0.0, %v678
    %v823 = vsel %vm736, 0.0, %v679
    %v824 = vsel %vm737, 0.0, %v680
    %v825 = vsel %vm735, 0.0, %v681
    %v826 = vsel %vm736, 0.0, %v682
    %v827 = vsel %vm737, 0.0, %v683
    %v828 = vsel %vm735, 0.0, %v684
    %v829 = vsel %vm736, 0.0, %v685
    %v830 = vsel %vm737, 0.0, %v686
    %v831 = vsel %vm738, 0.0, %v687
    %v832 = vsel %vm739, 0.0, %v688
    %v833 = vsel %vm740, 0.0, %v689
    %v834 = vsel %vm738, 0.0, %v690
    %v835 = vsel %vm739, 0.0, %v691
    %v836 = vsel %vm740, 0.0, %v692
    %v837 = vsel %vm738, 0.0, %v693
    %v838 = vsel %vm739, 0.0, %v694
    %v839 = vsel %vm740, 0.0, %v695
    %v840 = vsel %vm738, 0.0, %v696
    %v841 = vsel %vm739, 0.0, %v697
    %v842 = vsel %vm740, 0.0, %v698
    %v843 = vsel %vm738, 0.0, %v699
    %v844 = vsel %vm739, 0.0, %v700
    %v845 = vsel %vm740, 0.0, %v701
    %v846 = vsel %vm738, 0.0, %v702
    %v847 = vsel %vm739, 0.0, %v703
    %v848 = vsel %vm740, 0.0, %v704
    %v849 = vsel %vm738, 0.0, %v705
    %v850 = vsel %vm739, 0.0, %v706
    %v851 = vsel %vm740, 0.0, %v707
    %v852 = vsel %vm738, 0.0, %v708
    %v853 = vsel %vm739, 0.0, %v709
    %v854 = vsel %vm740, 0.0, %v710
    %v855 = vsel %vm738, 0.0, %v711
    %v856 = vsel %vm739, 0.0, %v712
    %v857 = vsel %vm740, 0.0, %v713
    %v858 = vsel %vm738, 0.0, %v714
    %v859 = vsel %vm739, 0.0, %v715
    %v860 = vsel %vm740, 0.0, %v716
    %861 = vst [vmem:[#allocation5] sm:$0xff] %v741
    %862 = vst [vmem:[#allocation5 + $0x8] sm:$0xff] %v742
    %vm863 = vcmask 359424
    %864 = vst.msk [vmem:[#allocation5 + $0x10] sm:$0xff] %vm863, %v743
    %865 = vst [vmem:[#allocation5 + $0x18] sm:$0xff] %v744
    %866 = vst [vmem:[#allocation5 + $0x20] sm:$0xff] %v745
    %867 = vst.msk [vmem:[#allocation5 + $0x28] sm:$0xff] %vm863, %v746
    %868 = vst [vmem:[#allocation5 + $0x30] sm:$0xff] %v747
    %869 = vst [vmem:[#allocation5 + $0x38] sm:$0xff] %v748
    %870 = vst.msk [vmem:[#allocation5 + $0x40] sm:$0xff] %vm863, %v749
    %871 = vst [vmem:[#allocation5 + $0x48] sm:$0xff] %v750
    %872 = vst [vmem:[#allocation5 + $0x50] sm:$0xff] %v751
    %873 = vst.msk [vmem:[#allocation5 + $0x58] sm:$0xff] %vm863, %v752
    %874 = vst [vmem:[#allocation5 + $0x60] sm:$0xff] %v753
    %875 = vst [vmem:[#allocation5 + $0x68] sm:$0xff] %v754
    %876 = vst.msk [vmem:[#allocation5 + $0x70] sm:$0xff] %vm863, %v755
    %877 = vst [vmem:[#allocation5 + $0x78] sm:$0xff] %v756
    %878 = vst [vmem:[#allocation5 + $0x80] sm:$0xff] %v757
    %879 = vst.msk [vmem:[#allocation5 + $0x88] sm:$0xff] %vm863, %v758
    %880 = vst [vmem:[#allocation5 + $0x90] sm:$0xff] %v759
    %881 = vst [vmem:[#allocation5 + $0x98] sm:$0xff] %v760
    %882 = vst.msk [vmem:[#allocation5 + $0xa0] sm:$0xff] %vm863, %v761
    %883 = vst [vmem:[#allocation5 + $0xa8] sm:$0xff] %v762
    %884 = vst [vmem:[#allocation5 + $0xb0] sm:$0xff] %v763
    %885 = vst.msk [vmem:[#allocation5 + $0xb8] sm:$0xff] %vm863, %v764
    %886 = vst [vmem:[#allocation5 + $0xc0] sm:$0xff] %v765
    %887 = vst [vmem:[#allocation5 + $0xc8] sm:$0xff] %v766
    %888 = vst.msk [vmem:[#allocation5 + $0xd0] sm:$0xff] %vm863, %v767
    %889 = vst [vmem:[#allocation5 + $0xd8] sm:$0xff] %v768
    %890 = vst [vmem:[#allocation5 + $0xe0] sm:$0xff] %v769
    %891 = vst.msk [vmem:[#allocation5 + $0xe8] sm:$0xff] %vm863, %v770
    %892 = vst [vmem:[#allocation5 + $0xf0] sm:$0xff] %v771
    %893 = vst [vmem:[#allocation5 + $0xf8] sm:$0xff] %v772
    %894 = vst.msk [vmem:[#allocation5 + $0x100] sm:$0xff] %vm863, %v773
    %895 = vst [vmem:[#allocation5 + $0x108] sm:$0xff] %v774
    %896 = vst [vmem:[#allocation5 + $0x110] sm:$0xff] %v775
    %897 = vst.msk [vmem:[#allocation5 + $0x118] sm:$0xff] %vm863, %v776
    %898 = vst [vmem:[#allocation5 + $0x120] sm:$0xff] %v777
    %899 = vst [vmem:[#allocation5 + $0x128] sm:$0xff] %v778
    %900 = vst.msk [vmem:[#allocation5 + $0x130] sm:$0xff] %vm863, %v779
    %901 = vst [vmem:[#allocation5 + $0x138] sm:$0xff] %v780
    %902 = vst [vmem:[#allocation5 + $0x140] sm:$0xff] %v781
    %903 = vst.msk [vmem:[#allocation5 + $0x148] sm:$0xff] %vm863, %v782
    %904 = vst [vmem:[#allocation5 + $0x150] sm:$0xff] %v783
    %905 = vst [vmem:[#allocation5 + $0x158] sm:$0xff] %v784
    %906 = vst.msk [vmem:[#allocation5 + $0x160] sm:$0xff] %vm863, %v785
    %907 = vst [vmem:[#allocation5 + $0x168] sm:$0xff] %v786
    %908 = vst [vmem:[#allocation5 + $0x170] sm:$0xff] %v787
    %909 = vst.msk [vmem:[#allocation5 + $0x178] sm:$0xff] %vm863, %v788
    %910 = vst [vmem:[#allocation5 + $0x180] sm:$0xff] %v789
    %911 = vst [vmem:[#allocation5 + $0x188] sm:$0xff] %v790
    %912 = vst.msk [vmem:[#allocation5 + $0x190] sm:$0xff] %vm863, %v791
    %913 = vst [vmem:[#allocation5 + $0x198] sm:$0xff] %v792
    %914 = vst [vmem:[#allocation5 + $0x1a0] sm:$0xff] %v793
    %915 = vst.msk [vmem:[#allocation5 + $0x1a8] sm:$0xff] %vm863, %v794
    %916 = vst [vmem:[#allocation5 + $0x1b0] sm:$0xff] %v795
    %917 = vst [vmem:[#allocation5 + $0x1b8] sm:$0xff] %v796
    %918 = vst.msk [vmem:[#allocation5 + $0x1c0] sm:$0xff] %vm863, %v797
    %919 = vst [vmem:[#allocation5 + $0x1c8] sm:$0xff] %v798
    %920 = vst [vmem:[#allocation5 + $0x1d0] sm:$0xff] %v799
    %921 = vst.msk [vmem:[#allocation5 + $0x1d8] sm:$0xff] %vm863, %v800
    %922 = vst [vmem:[#allocation5 + $0x1e0] sm:$0xff] %v801
    %923 = vst [vmem:[#allocation5 + $0x1e8] sm:$0xff] %v802
    %924 = vst.msk [vmem:[#allocation5 + $0x1f0] sm:$0xff] %vm863, %v803
    %925 = vst [vmem:[#allocation5 + $0x1f8] sm:$0xff] %v804
    %926 = vst [vmem:[#allocation5 + $0x200] sm:$0xff] %v805
    %927 = vst.msk [vmem:[#allocation5 + $0x208] sm:$0xff] %vm863, %v806
    %928 = vst [vmem:[#allocation5 + $0x210] sm:$0xff] %v807
    %929 = vst [vmem:[#allocation5 + $0x218] sm:$0xff] %v808
    %930 = vst.msk [vmem:[#allocation5 + $0x220] sm:$0xff] %vm863, %v809
    %931 = vst [vmem:[#allocation5 + $0x228] sm:$0xff] %v810
    %932 = vst [vmem:[#allocation5 + $0x230] sm:$0xff] %v811
    %933 = vst.msk [vmem:[#allocation5 + $0x238] sm:$0xff] %vm863, %v812
    %934 = vst [vmem:[#allocation5 + $0x240] sm:$0xff] %v813
    %935 = vst [vmem:[#allocation5 + $0x248] sm:$0xff] %v814
    %936 = vst.msk [vmem:[#allocation5 + $0x250] sm:$0xff] %vm863, %v815
    %937 = vst [vmem:[#allocation5 + $0x258] sm:$0xff] %v816
    %938 = vst [vmem:[#allocation5 + $0x260] sm:$0xff] %v817
    %939 = vst.msk [vmem:[#allocation5 + $0x268] sm:$0xff] %vm863, %v818
    %940 = vst [vmem:[#allocation5 + $0x270] sm:$0xff] %v819
    %941 = vst [vmem:[#allocation5 + $0x278] sm:$0xff] %v820
    %942 = vst.msk [vmem:[#allocation5 + $0x280] sm:$0xff] %vm863, %v821
    %943 = vst [vmem:[#allocation5 + $0x288] sm:$0xff] %v822
    %944 = vst [vmem:[#allocation5 + $0x290] sm:$0xff] %v823
    %945 = vst.msk [vmem:[#allocation5 + $0x298] sm:$0xff] %vm863, %v824
    %946 = vst [vmem:[#allocation5 + $0x2a0] sm:$0xff] %v825
    %947 = vst [vmem:[#allocation5 + $0x2a8] sm:$0xff] %v826
    %948 = vst.msk [vmem:[#allocation5 + $0x2b0] sm:$0xff] %vm863, %v827
    %949 = vst [vmem:[#allocation5 + $0x2b8] sm:$0xff] %v828
    %950 = vst [vmem:[#allocation5 + $0x2c0] sm:$0xff] %v829
    %951 = vst.msk [vmem:[#allocation5 + $0x2c8] sm:$0xff] %vm863, %v830
    %952 = vst [vmem:[#allocation5 + $0x2d0] sm:$0xff] %v831
    %953 = vst [vmem:[#allocation5 + $0x2d8] sm:$0xff] %v832
    %954 = vst.msk [vmem:[#allocation5 + $0x2e0] sm:$0xff] %vm863, %v833
    %955 = vst [vmem:[#allocation5 + $0x2e8] sm:$0xff] %v834
    %956 = vst [vmem:[#allocation5 + $0x2f0] sm:$0xff] %v835
    %957 = vst.msk [vmem:[#allocation5 + $0x2f8] sm:$0xff] %vm863, %v836
    %958 = vst [vmem:[#allocation5 + $0x300] sm:$0xff] %v837
    %959 = vst [vmem:[#allocation5 + $0x308] sm:$0xff] %v838
    %960 = vst.msk [vmem:[#allocation5 + $0x310] sm:$0xff] %vm863, %v839
    %961 = vst [vmem:[#allocation5 + $0x318] sm:$0xff] %v840
    %962 = vst [vmem:[#allocation5 + $0x320] sm:$0xff] %v841
    %963 = vst.msk [vmem:[#allocation5 + $0x328] sm:$0xff] %vm863, %v842
    %964 = vst [vmem:[#allocation5 + $0x330] sm:$0xff] %v843
    %965 = vst [vmem:[#allocation5 + $0x338] sm:$0xff] %v844
    %966 = vst.msk [vmem:[#allocation5 + $0x340] sm:$0xff] %vm863, %v845
    %967 = vst [vmem:[#allocation5 + $0x348] sm:$0xff] %v846
    %968 = vst [vmem:[#allocation5 + $0x350] sm:$0xff] %v847
    %969 = vst.msk [vmem:[#allocation5 + $0x358] sm:$0xff] %vm863, %v848
    %970 = vst [vmem:[#allocation5 + $0x360] sm:$0xff] %v849
    %971 = vst [vmem:[#allocation5 + $0x368] sm:$0xff] %v850
    %972 = vst.msk [vmem:[#allocation5 + $0x370] sm:$0xff] %vm863, %v851
    %973 = vst [vmem:[#allocation5 + $0x378] sm:$0xff] %v852
    %974 = vst [vmem:[#allocation5 + $0x380] sm:$0xff] %v853
    %975 = vst.msk [vmem:[#allocation5 + $0x388] sm:$0xff] %vm863, %v854
    %976 = vst [vmem:[#allocation5 + $0x390] sm:$0xff] %v855
    %977 = vst [vmem:[#allocation5 + $0x398] sm:$0xff] %v856
    %978 = vst.msk [vmem:[#allocation5 + $0x3a0] sm:$0xff] %vm863, %v857
    %979 = vst [vmem:[#allocation5 + $0x3a8] sm:$0xff] %v858
    %980 = vst [vmem:[#allocation5 + $0x3b0] sm:$0xff] %v859
    %981 = vst.msk [vmem:[#allocation5 + $0x3b8] sm:$0xff] %vm863, %v860
    // Predicated region
    $region26: #{tpu_custom_call.1} parent=1 // pred_check
      _
    $region27: #{tpu_custom_call.1} parent=1 // pred_check_branch
      %983 = sbr.rel (0) target = $region29
    $region28: #{tpu_custom_call.1} parent=1 // pred_region
      %985 = vsyncadd [#allocation4], 0
      %s986 = sshll.u32 [#allocation5], 4
      %s987 = int_to_ptr.vmem [resolvable:$true] %s986
      %s988 = sshll.u32 %s5, 4
      %s989 = int_to_ptr.hbm [resolvable:$true] %s988
      %994 = dma.vmem_to_hbm [thread:$0]  %s987, 15360, %s989, [#allocation4], 384, 384, 24
    $region29: #{tpu_custom_call.1} parent=1 // pred_fallthru
      _
    // Predicated region
    $region30: #{tpu_custom_call.1} parent=1 // pred_check
      _
    $region31: #{tpu_custom_call.1} parent=1 // pred_check_branch
      %996 = sbr.rel (0) target = $region33
    $region32: #{tpu_custom_call.1} parent=1 // pred_region
      %998 = dma.done [#allocation4], 15360
    $region33: #{tpu_custom_call.1} parent=1 // pred_fallthru
      _
    %999 = vsyncpa [#allocation3], 1
    %1000 = vsyncpa [#allocation4], 1

</llo_original>
